<compile_context>
chip_gen: v5e
topology: v5e:2x2
jax: 0.10.0
libtpu: 0.0.40
codegen_flags: <defaults>
</compile_context>

<pallas_src>
import functools

import jax
import jax.numpy as jnp
from jax.experimental import pallas as pl
from jax.experimental.pallas import tpu as pltpu

EPS = 1e-5
LANE = 128      # vreg lane width: last-dim alignment target
SUBLANE = 8     # f32 sublane count: second-to-last-dim alignment target


def _round_up(n, m):
    return ((n + m - 1) // m) * m


def expert_kernel(x_ref, w1_ref, b1_ref, w2_ref, b2_ref, o_ref):
    # fc1 with bn1 folded in -> relu
    h = jnp.dot(x_ref[...], w1_ref[...], preferred_element_type=jnp.float32)
    h = jnp.maximum(h + b1_ref[...], 0.0)
    # dropout: identity in eval mode
    # TODO(synk): training-mode dropout (random mask) not implemented; eval semantics used.
    # fc2 with bn2 folded in
    y = jnp.dot(h, w2_ref[...], preferred_element_type=jnp.float32)
    o_ref[...] = (y + b2_ref[...]).astype(o_ref.dtype)


def fold_bn(params):
    """Fold eval-mode BatchNorm (running stats + affine) into the bias-free linears."""
    s1 = params["g1"] * jax.lax.rsqrt(params["v1"] + EPS)   # [1, hid]
    w1 = params["w1"] * s1                                  # [in, hid]
    b1 = params["b1"] - params["m1"] * s1                   # [1, hid]
    s2 = params["g2"] * jax.lax.rsqrt(params["v2"] + EPS)   # [1, out]
    w2 = params["w2"] * s2                                  # [hid, out]
    b2 = params["b2"] - params["m2"] * s2                   # [1, out]
    return w1, b1, w2, b2


def _pad2d(a, rows, cols):
    return jnp.pad(a, ((0, rows - a.shape[0]), (0, cols - a.shape[1])))


@functools.partial(jax.jit, static_argnames=("tm",))
def expert_forward(x, params, *, tm=256):
    """x: [B, input_dim] float32 -> [B, output_dim] float32 (eval-mode Expert)."""
    B, in_dim = x.shape
    hid = params["w1"].shape[1]
    out_dim = params["w2"].shape[1]

    w1, b1, w2, b2 = fold_bn(params)

    # Lane-dense / sublane-aligned padding; zeros are inert through the MLP.
    in_p = _round_up(in_dim, LANE)
    hid_p = _round_up(hid, LANE)
    out_p = _round_up(out_dim, LANE)

    w1 = _pad2d(w1, in_p, hid_p)
    b1 = _pad2d(b1, 1, hid_p)
    w2 = _pad2d(w2, hid_p, out_p)
    b2 = _pad2d(b2, 1, out_p)

    bp = _round_up(B, SUBLANE)
    xp = _pad2d(x, bp, in_p)

    if bp <= tm:
        # Small batch: single un-pipelined invocation, everything resident in VMEM.
        vmem = pl.BlockSpec(memory_space=pltpu.MemorySpace.VMEM)
        out = pl.pallas_call(
            expert_kernel,
            out_shape=jax.ShapeDtypeStruct((bp, out_p), jnp.float32),
            in_specs=[vmem] * 5,
            out_specs=vmem,
        )(xp, w1, b1, w2, b2)
    else:
        # Large batch: grid over token-row tiles; folded weights/biases stay resident.
        grid = (pl.cdiv(bp, tm),)
        out = pl.pallas_call(
            expert_kernel,
            out_shape=jax.ShapeDtypeStruct((bp, out_p), jnp.float32),
            grid=grid,
            in_specs=[
                pl.BlockSpec((tm, in_p), lambda i: (i, 0)),
                pl.BlockSpec((in_p, hid_p), lambda i: (0, 0)),
                pl.BlockSpec((1, hid_p), lambda i: (0, 0)),
                pl.BlockSpec((hid_p, out_p), lambda i: (0, 0)),
                pl.BlockSpec((1, out_p), lambda i: (0, 0)),
            ],
            out_specs=pl.BlockSpec((tm, out_p), lambda i: (i, 0)),
            compiler_params=pltpu.CompilerParams(
                dimension_semantics=("parallel",)),
        )(xp, w1, b1, w2, b2)

    return out[:B, :out_dim]


def reference_forward(x, p):
    h = x @ p["w1"]
    h = (h - p["m1"]) * jax.lax.rsqrt(p["v1"] + EPS) * p["g1"] + p["b1"]
    h = jnp.maximum(h, 0.0)
    y = h @ p["w2"]
    return (y - p["m2"]) * jax.lax.rsqrt(p["v2"] + EPS) * p["g2"] + p["b2"]


if __name__ == "__main__":
    B, input_dim, hidden_dim, output_dim = 8, 32, 64, 32

    key = jax.random.PRNGKey(0)
    keys = jax.random.split(key, 13)

    x = jax.random.normal(keys[0], (B, input_dim), dtype=jnp.float32)

    params = {
        # PyTorch fc1.weight is [hidden, input]; we store its transpose.
        "w1": jax.random.normal(keys[1], (input_dim, hidden_dim), jnp.float32) * 0.1,
        "g1": jax.random.normal(keys[2], (1, hidden_dim), jnp.float32) * 0.1 + 1.0,
        "b1": jax.random.normal(keys[3], (1, hidden_dim), jnp.float32) * 0.1,
        "m1": jax.random.normal(keys[4], (1, hidden_dim), jnp.float32) * 0.1,
        "v1": jax.random.uniform(keys[5], (1, hidden_dim), jnp.float32, 0.5, 1.5),
        # PyTorch fc2.weight is [output, hidden]; we store its transpose.
        "w2": jax.random.normal(keys[6], (hidden_dim, output_dim), jnp.float32) * 0.1,
        "g2": jax.random.normal(keys[7], (1, output_dim), jnp.float32) * 0.1 + 1.0,
        "b2": jax.random.normal(keys[8], (1, output_dim), jnp.float32) * 0.1,
        "m2": jax.random.normal(keys[9], (1, output_dim), jnp.float32) * 0.1,
        "v2": jax.random.uniform(keys[10], (1, output_dim), jnp.float32, 0.5, 1.5),
    }

    # Small batch: exercises the single un-pipelined VMEM-resident path.
    out = jax.block_until_ready(expert_forward(x, params))
    ref = reference_forward(x, params)
    assert out.shape == (B, output_dim)
    assert jnp.allclose(out, ref, atol=1e-4, rtol=1e-4), \
        float(jnp.max(jnp.abs(out - ref)))

    # Larger batch, tile-aligned: exercises the grid-over-token-rows path.
    xb = jax.random.normal(keys[11], (512, input_dim), dtype=jnp.float32)
    outb = jax.block_until_ready(expert_forward(xb, params))
    refb = reference_forward(xb, params)
    assert outb.shape == (512, output_dim)
    assert jnp.allclose(outb, refb, atol=1e-4, rtol=1e-4), \
        float(jnp.max(jnp.abs(outb - refb)))

    # Larger batch, NOT tile-aligned: exercises the partial last row-tile.
    xc = jax.random.normal(keys[12], (600, input_dim), dtype=jnp.float32)
    outc = jax.block_until_ready(expert_forward(xc, params))
    refc = reference_forward(xc, params)
    assert outc.shape == (600, output_dim)
    assert jnp.allclose(outc, refc, atol=1e-4, rtol=1e-4), \
        float(jnp.max(jnp.abs(outc - refc)))

    print("KERNEL_OK")
</pallas_src>

<mosaic_0001>
module attributes {stable_mosaic.version = 11 : i64} {
  func.func @expert_kernel(%arg0: memref<8x128xf32, #tpu.memory_space<vmem>>, %arg1: memref<128x128xf32, #tpu.memory_space<vmem>>, %arg2: memref<1x128xf32, #tpu.memory_space<vmem>>, %arg3: memref<128x128xf32, #tpu.memory_space<vmem>>, %arg4: memref<1x128xf32, #tpu.memory_space<vmem>>, %arg5: memref<8x128xf32, #tpu.memory_space<vmem>>) attributes {dimension_semantics = [], scalar_prefetch = 0 : i64, scratch_operands = 0 : i64, tpu.core_type = #tpu.core_type<tc>} {
    %c0 = arith.constant 0 : index
    %c0_0 = arith.constant 0 : index
    %0 = vector.load %arg0[%c0, %c0_0] : memref<8x128xf32, #tpu.memory_space<vmem>>, vector<8x128xf32>
    %c0_1 = arith.constant 0 : index
    %c0_2 = arith.constant 0 : index
    %1 = vector.load %arg1[%c0_1, %c0_2] : memref<128x128xf32, #tpu.memory_space<vmem>>, vector<128x128xf32>
    %cst = arith.constant dense<0.000000e+00> : vector<8x128xf32>
    %2 = tpu.matmul %0, %1, %cst {dimension_numbers = #tpu.dot_dimension_numbers<[1], [0], [0], [1], [0, 0, 1, 1], [], []>} : vector<8x128xf32>, vector<128x128xf32>, vector<8x128xf32> -> vector<8x128xf32>
    %c0_3 = arith.constant 0 : index
    %c0_4 = arith.constant 0 : index
    %3 = vector.load %arg2[%c0_3, %c0_4] : memref<1x128xf32, #tpu.memory_space<vmem>>, vector<1x128xf32>
    %4 = vector.broadcast %3 : vector<1x128xf32> to vector<8x128xf32>
    %5 = arith.addf %2, %4 : vector<8x128xf32>
    %cst_5 = arith.constant 0.000000e+00 : f32
    %6 = vector.broadcast %cst_5 : f32 to vector<8x128xf32>
    %7 = arith.maximumf %5, %6 : vector<8x128xf32>
    %c0_6 = arith.constant 0 : index
    %c0_7 = arith.constant 0 : index
    %8 = vector.load %arg3[%c0_6, %c0_7] : memref<128x128xf32, #tpu.memory_space<vmem>>, vector<128x128xf32>
    %cst_8 = arith.constant dense<0.000000e+00> : vector<8x128xf32>
    %9 = tpu.matmul %7, %8, %cst_8 {dimension_numbers = #tpu.dot_dimension_numbers<[1], [0], [0], [1], [0, 0, 1, 1], [], []>} : vector<8x128xf32>, vector<128x128xf32>, vector<8x128xf32> -> vector<8x128xf32>
    %c0_9 = arith.constant 0 : index
    %c0_10 = arith.constant 0 : index
    %10 = vector.load %arg4[%c0_9, %c0_10] : memref<1x128xf32, #tpu.memory_space<vmem>>, vector<1x128xf32>
    %11 = vector.broadcast %10 : vector<1x128xf32> to vector<8x128xf32>
    %12 = arith.addf %9, %11 : vector<8x128xf32>
    %c0_11 = arith.constant 0 : index
    %c0_12 = arith.constant 0 : index
    %13 = vector.load %arg5[%c0_11, %c0_12] : memref<8x128xf32, #tpu.memory_space<vmem>>, vector<8x128xf32>
    tpu.vector_store %arg5[%c0_11, %c0_12], %12 {strides = array<i32>} : memref<8x128xf32, #tpu.memory_space<vmem>>, vector<8x128xf32>,
    return
  }
}

</mosaic_0001>

<llo_original>
// kernel: expert_forward.1
$region0: #{expert_forward.1}
  #allocation0 [shape = 'u32[]', space=smem, size = 0x4, offset = 0x4, fixed_abs, tag = 'smem constant byte address 0x4 - core index']
  #allocation1 [shape = 'u32[72,128]{1,0:T(1,128)}', space=vmem, size = 0x9000, scoped, tag = 'internal scratch']
  %s0 = inlined_call_operand.vmem [shape: f32[8,128], index: 0, kind: input, shape index: {}]
  %s1 = inlined_call_operand.vmem [shape: f32[128,128], index: 1, kind: input, shape index: {}]
  %s2 = inlined_call_operand.vmem [shape: f32[1,128], index: 2, kind: input, shape index: {}]
  %s3 = inlined_call_operand.vmem [shape: f32[128,128], index: 3, kind: input, shape index: {}]
  %s4 = inlined_call_operand.vmem [shape: f32[1,128], index: 4, kind: input, shape index: {}]
  %s5 = inlined_call_operand.hbm [shape: f32[8,128], index: 5, kind: output, shape index: {}]
  %s6 = sld [smem:[#allocation0]]
  $region30: #{expert_forward.1} parent=0
    _
  %s8 = ssub.s32 1, %s6
  %s9 = scalar_select 0, %s8, %s6
  $region1: #{expert_forward.1} parent=0
    #allocation2 [shape = 'u8[4096]{0}', space=vmem, size = 0x1000, scoped, tag = 'output window, operand 0, single buffered']
    #allocation3 [shape = 's32[1]{0}', space=sflag, size = 0x4, scoped, tag = 'scoped memory for expert_forward.1']
    %10 = vsyncpa [#allocation3], 0
    // Predicated region
    $region2: #{expert_forward.1} parent=1 // pred_check
      _
    $region3: #{expert_forward.1} parent=1 // pred_check_branch
      %12 = sbr.rel (0) target = $region5
    $region4: #{expert_forward.1} parent=1 // pred_region
      _
    $region5: #{expert_forward.1} parent=1 // pred_fallthru
      _
    // Predicated region
    $region6: #{expert_forward.1} parent=1 // pred_check
      _
    $region7: #{expert_forward.1} parent=1 // pred_check_branch
      %14 = sbr.rel (0) target = $region9
    $region8: #{expert_forward.1} parent=1 // pred_region
      _
    $region9: #{expert_forward.1} parent=1 // pred_fallthru
      _
    // Predicated region
    $region10: #{expert_forward.1} parent=1 // pred_check
      _
    $region11: #{expert_forward.1} parent=1 // pred_check_branch
      %16 = sbr.rel (0) target = $region13
    $region12: #{expert_forward.1} parent=1 // pred_region
      _
    $region13: #{expert_forward.1} parent=1 // pred_fallthru
      _
    // Predicated region
    $region14: #{expert_forward.1} parent=1 // pred_check
      _
    $region15: #{expert_forward.1} parent=1 // pred_check_branch
      %18 = sbr.rel (0) target = $region17
    $region16: #{expert_forward.1} parent=1 // pred_region
      _
    $region17: #{expert_forward.1} parent=1 // pred_fallthru
      _
    // Predicated region
    $region18: #{expert_forward.1} parent=1 // pred_check
      _
    $region19: #{expert_forward.1} parent=1 // pred_check_branch
      %20 = sbr.rel (0) target = $region21
    $region20: #{expert_forward.1} parent=1 // pred_region
      _
    $region21: #{expert_forward.1} parent=1 // pred_fallthru
      _
    %v21 = vld [vmem:[%s0] sm:$0xff]
    %v22 = vld [vmem:[%s1] sm:$0xff]
    %v23 = vld [vmem:[%s1 + $0x8] sm:$0xff]
    %v24 = vld [vmem:[%s1 + $0x10] sm:$0xff]
    %v25 = vld [vmem:[%s1 + $0x18] sm:$0xff]
    %v26 = vld [vmem:[%s1 + $0x20] sm:$0xff]
    %v27 = vld [vmem:[%s1 + $0x28] sm:$0xff]
    %v28 = vld [vmem:[%s1 + $0x30] sm:$0xff]
    %v29 = vld [vmem:[%s1 + $0x38] sm:$0xff]
    %v30 = vld [vmem:[%s1 + $0x40] sm:$0xff]
    %v31 = vld [vmem:[%s1 + $0x48] sm:$0xff]
    %v32 = vld [vmem:[%s1 + $0x50] sm:$0xff]
    %v33 = vld [vmem:[%s1 + $0x58] sm:$0xff]
    %v34 = vld [vmem:[%s1 + $0x60] sm:$0xff]
    %v35 = vld [vmem:[%s1 + $0x68] sm:$0xff]
    %v36 = vld [vmem:[%s1 + $0x70] sm:$0xff]
    %v37 = vld [vmem:[%s1 + $0x78] sm:$0xff]
    %v38 = vld [vmem:[%s2] sm:$0x1]
    %v40 = vperm.slane %v38, 0
    %42 = vmatpush.msra.mxu0 %v37
    %43 = vmatpush.msra.mxu0 %v36
    %44 = vmatpush.msra.mxu0 %v35
    %45 = vmatpush.msra.mxu0 %v34
    %46 = vmatpush.msra.mxu0 %v33
    %47 = vmatpush.msra.mxu0 %v32
    %48 = vmatpush.msra.mxu0 %v31
    %49 = vmatpush.msra.mxu0 %v30
    %50 = vmatpush.msra.mxu0 %v29
    %51 = vmatpush.msra.mxu0 %v28
    %52 = vmatpush.msra.mxu0 %v27
    %53 = vmatpush.msra.mxu0 %v26
    %54 = vmatpush.msra.mxu0 %v25
    %55 = vmatpush.msra.mxu0 %v24
    %56 = vmatpush.msra.mxu0 %v23
    %57 = vmatpush.msra.mxu0 %v22
    %58 = vmatmul.f32.gmra.mxu0 %v21
    %v59 = vpop.f32.mrf.mxu0
    %v60 = vadd.f32 %v40, %v59
    %61 = vdwg.mxu0
    %v62 = vmax.f32 %v60, 0.0
    %v63 = vld [vmem:[%s3] sm:$0xff]
    %v64 = vld [vmem:[%s3 + $0x8] sm:$0xff]
    %v65 = vld [vmem:[%s3 + $0x10] sm:$0xff]
    %v66 = vld [vmem:[%s3 + $0x18] sm:$0xff]
    %v67 = vld [vmem:[%s3 + $0x20] sm:$0xff]
    %v68 = vld [vmem:[%s3 + $0x28] sm:$0xff]
    %v69 = vld [vmem:[%s3 + $0x30] sm:$0xff]
    %v70 = vld [vmem:[%s3 + $0x38] sm:$0xff]
    %v71 = vld [vmem:[%s3 + $0x40] sm:$0xff]
    %v72 = vld [vmem:[%s3 + $0x48] sm:$0xff]
    %v73 = vld [vmem:[%s3 + $0x50] sm:$0xff]
    %v74 = vld [vmem:[%s3 + $0x58] sm:$0xff]
    %v75 = vld [vmem:[%s3 + $0x60] sm:$0xff]
    %v76 = vld [vmem:[%s3 + $0x68] sm:$0xff]
    %v77 = vld [vmem:[%s3 + $0x70] sm:$0xff]
    %v78 = vld [vmem:[%s3 + $0x78] sm:$0xff]
    %v79 = vld [vmem:[%s4] sm:$0x1]
    %v81 = vperm.slane %v79, 0
    %83 = vmatpush.msra.mxu0 %v78
    %84 = vmatpush.msra.mxu0 %v77
    %85 = vmatpush.msra.mxu0 %v76
    %86 = vmatpush.msra.mxu0 %v75
    %87 = vmatpush.msra.mxu0 %v74
    %88 = vmatpush.msra.mxu0 %v73
    %89 = vmatpush.msra.mxu0 %v72
    %90 = vmatpush.msra.mxu0 %v71
    %91 = vmatpush.msra.mxu0 %v70
    %92 = vmatpush.msra.mxu0 %v69
    %93 = vmatpush.msra.mxu0 %v68
    %94 = vmatpush.msra.mxu0 %v67
    %95 = vmatpush.msra.mxu0 %v66
    %96 = vmatpush.msra.mxu0 %v65
    %97 = vmatpush.msra.mxu0 %v64
    %98 = vmatpush.msra.mxu0 %v63
    %99 = vmatmul.f32.gmra.mxu0 %v62
    %v100 = vpop.f32.mrf.mxu0
    %v101 = vadd.f32 %v81, %v100
    %102 = vdwg.mxu0
    %103 = vst [vmem:[#allocation2] sm:$0xff] %v101
    // Predicated region
    $region22: #{expert_forward.1} parent=1 // pred_check
      _
    $region23: #{expert_forward.1} parent=1 // pred_check_branch
      %105 = sbr.rel (0) target = $region25
    $region24: #{expert_forward.1} parent=1 // pred_region
      %107 = vsyncadd [#allocation3], 0
      %s109 = sshll.u32 [#allocation2], 4
      %s110 = int_to_ptr.vmem [resolvable:$true] %s109
      %s111 = sshll.u32 %s5, 4
      %s112 = int_to_ptr.hbm [resolvable:$true] %s111
      %114 = dma.vmem_to_hbm [thread:$0]  %s110, 128, %s112, [#allocation3]
    $region25: #{expert_forward.1} parent=1 // pred_fallthru
      _
    // Predicated region
    $region26: #{expert_forward.1} parent=1 // pred_check
      _
    $region27: #{expert_forward.1} parent=1 // pred_check_branch
      %116 = sbr.rel (0) target = $region29
    $region28: #{expert_forward.1} parent=1 // pred_region
      %118 = dma.done [#allocation3], 128
    $region29: #{expert_forward.1} parent=1 // pred_fallthru
      _
    %119 = vsyncpa [#allocation3], 1

</llo_original>
